<compile_context>
chip_gen: v7x
topology: tpu7x:2x2x1
jax: 0.10.0
libtpu: 0.0.40
codegen_flags: <defaults>
</compile_context>

<pallas_src>
import functools

import jax
import jax.numpy as jnp
from jax import lax
from jax.experimental import pallas as pl
from jax.experimental.pallas import tpu as pltpu

FOCAL_ALPHA = 0.25   # cfg.MODEL.OneNet.ALPHA
FOCAL_GAMMA = 2.0    # cfg.MODEL.OneNet.GAMMA


# ----------------------------------------------------------------------------
# Pallas kernel: "all-background" sigmoid focal loss, summed per image.
#   loss_bg(x) = (1 - alpha) * sigmoid(x)^gamma * softplus(x)
# The handful of matched positives are corrected in the wrapper.
# ----------------------------------------------------------------------------
def _bg_focal_kernel(x_ref, out_ref, acc_ref, *, alpha, gamma, rem):
    i = pl.program_id(1)                    # tile index along the lane axis
    n_tiles = pl.num_programs(1)

    x = x_ref[0].astype(jnp.float32)        # (R, TN) -- in-register f32 cast

    # Shared-transcendental form (3 EUP pushes: exp, log1p, approx-recip; the
    # rest is VPU).  After the VALU trims, EUP sits within ~1 cycle of the
    # VALU slot; if a bundle dump shows EUP saturating, log1p(e) on (0,1] can
    # be swapped for a short VALU polynomial.
    e = jnp.exp(-jnp.abs(x))
    bce = jnp.maximum(x, 0.0) + jnp.log1p(e)            # softplus(x)
    r = pl.reciprocal(1.0 + e, approx=True)             # EUP slot, nearly free
    p = jnp.where(x >= 0.0, r, 1.0 - r)                 # sigmoid(x)
    if gamma == 2.0:
        mod = p * p
    else:
        mod = jnp.power(p, gamma)
    loss = ((1.0 - alpha) * bce) * mod                  # (R, TN)

    # Partial class/sublane reduce -> (1, TN); XLU is otherwise idle here.
    row = jnp.sum(loss, axis=0, keepdims=True)

    if rem == 0:
        # Lane extent divides the tile: no mask arithmetic emitted at all.
        @pl.when(i == 0)
        def _():
            acc_ref[...] = row              # first tile writes (no zero+add)

        @pl.when(i > 0)
        def _():
            acc_ref[...] += row
    else:
        # A ragged last tile exists (=> n_tiles >= 2); only it pays the mask.
        last = i == n_tiles - 1

        @pl.when(i == 0)
        def _():
            acc_ref[...] = row

        @pl.when(jnp.logical_and(i > 0, jnp.logical_not(last)))
        def _():
            acc_ref[...] += row

        @pl.when(last)
        def _():
            col = lax.broadcasted_iota(jnp.int32, row.shape, 1)
            acc_ref[...] += jnp.where(col < rem, row, 0.0)

    @pl.when(i == n_tiles - 1)
    def _():
        out_ref[...] = jnp.sum(acc_ref[...]).reshape(1, 1, 1)


def _fold_rows(k, hw, itemsize):
    """Factor K*HW into (rows, lanes) for full vreg occupancy.

    Pure row-major reshape (no transpose); the kernel is class-agnostic so the
    factorization is free to ignore the (K, HW) structure.
    """
    t = k * hw
    prefs = (16, 8, 32, 24) if itemsize == 2 else (8, 16, 32, 24)
    for r in prefs:
        if t % r == 0 and (t // r) % 128 == 0:
            return r, t // r
    return k, hw                            # fall back: keep K on sublanes


def _pick_tile_n(lanes, rows, itemsize, *, block_bytes=1 << 20, cap=32768):
    """Largest lane tile with <= ~1 MiB per (double-buffered) input block.

    2 buffers x 1 MiB + a (1, tile_n) f32 accumulator stays far below every
    generation's scoped-VMEM default (incl. v7x's 32 MiB / 64 MiB physical).
    """
    per_lane = rows * itemsize
    max_tile = max(128, min(cap, (block_bytes // per_lane) // 128 * 128))
    return lanes if lanes <= max_tile else max_tile


def focal_bg_loss_sum_per_image(logits_cm, *, alpha, gamma):
    """logits_cm: (bs, K, HW) in native dtype.

    Returns a (bs,) f32 vector: per-image sum of the background focal loss
    over every (class, position) entry.
    """
    bs, k, hw = logits_cm.shape
    itemsize = jnp.dtype(logits_cm.dtype).itemsize
    rows, lanes = _fold_rows(k, hw, itemsize)
    x = logits_cm.reshape(bs, rows, lanes)          # pure row-major reshape

    tile_n = _pick_tile_n(lanes, rows, itemsize)
    n_tiles = pl.cdiv(lanes, tile_n)
    rem = lanes % tile_n                            # static ragged-tile size

    kern = functools.partial(_bg_focal_kernel, alpha=float(alpha),
                             gamma=float(gamma), rem=rem)
    # TODO(synk): for bs == 1 on v7x (2 TensorCores), add a second "parallel"
    # grid axis splitting the lane tiles so the second core is not idle.
    out = pl.pallas_call(
        kern,
        out_shape=jax.ShapeDtypeStruct((bs, 1, 1), jnp.float32),
        grid_spec=pltpu.PrefetchScalarGridSpec(
            num_scalar_prefetch=0,
            grid=(bs, n_tiles),
            in_specs=[pl.BlockSpec((1, rows, tile_n), lambda b, i: (b, 0, i))],
            out_specs=pl.BlockSpec((1, 1, 1), lambda b, i: (b, 0, 0)),
            scratch_shapes=[pltpu.VMEM((1, tile_n), jnp.float32)]),
        compiler_params=pltpu.CompilerParams(
            dimension_semantics=("parallel", "arbitrary")),
    )(x)
    return out[:, 0, 0]


# ----------------------------------------------------------------------------
# Matched-position correction: swap the background focal term for the
# positive-class term on the ~tens of matched logits (plain jnp, XLA-fused).
# ----------------------------------------------------------------------------
def focal_matched_correction(logits_cm, batch_idx, src_idx, labels, *, alpha, gamma):
    bs, k, hw = logits_cm.shape
    m = int(batch_idx.shape[0])
    x = logits_cm[batch_idx, labels, src_idx].astype(jnp.float32)   # (M,)

    # Emulate the reference scatter's last-write-wins when several GTs match
    # the same position (M is tiny, so an O(M^2) dedup is free).
    flat = batch_idx * hw + src_idx
    order = jnp.arange(m, dtype=jnp.int32)
    overridden = jnp.any((flat[:, None] == flat[None, :])
                         & (order[None, :] > order[:, None]), axis=1)
    keep = jnp.logical_not(overridden)

    sp_pos = jax.nn.softplus(-x)            # -log sigmoid(x)
    sp_neg = jax.nn.softplus(x)             # -log(1 - sigmoid(x))
    p = jax.nn.sigmoid(x)
    l_pos = alpha * jnp.power(1.0 - p, gamma) * sp_pos
    l_neg = (1.0 - alpha) * jnp.power(p, gamma) * sp_neg
    return jnp.sum(jnp.where(keep, l_pos - l_neg, 0.0))


# ----------------------------------------------------------------------------
# Matched-box losses: tiny (tens of rows) -> plain jnp, fused by XLA.
# ----------------------------------------------------------------------------
def box_losses_sum(src_boxes, tgt_boxes, image_size):
    s = src_boxes.astype(jnp.float32)        # (M, 4) xyxy
    t = tgt_boxes.astype(jnp.float32)        # (M, 4) xyxy
    sz = image_size.astype(jnp.float32)      # (M, 4)

    area_s = (s[:, 2] - s[:, 0]) * (s[:, 3] - s[:, 1])
    area_t = (t[:, 2] - t[:, 0]) * (t[:, 3] - t[:, 1])
    iw = jnp.maximum(jnp.minimum(s[:, 2], t[:, 2]) - jnp.maximum(s[:, 0], t[:, 0]), 0.0)
    ih = jnp.maximum(jnp.minimum(s[:, 3], t[:, 3]) - jnp.maximum(s[:, 1], t[:, 1]), 0.0)
    inter = iw * ih
    union = area_s + area_t - inter
    # TODO(synk): reference uses box_ops.iou_rotate_calculate (rotated IoU,
    # defined outside this module); boxes here are axis-aligned xyxy so the
    # axis-aligned IoU diagonal is used instead.
    iou = inter / jnp.maximum(union, 1e-9)
    giou_sum = jnp.sum(1.0 - iou)

    l1_sum = jnp.sum(jnp.abs(s / sz - t / sz))
    return giou_sum, l1_sum


# ----------------------------------------------------------------------------
# Glue: matcher + SetCriterion.forward
# ----------------------------------------------------------------------------
def min_cost_matcher(logits_cm, boxes_cm, targets):
    # TODO(synk): stand-in for the injected OneNet MinCostMatcher (real one
    # uses focal cls cost + L1 + GIoU); per the review, only the gathered
    # label rows are sigmoid'ed (nt, HW), not the full (K, HW) map, and the
    # small per-image Python loop is kept (could be padded/vmapped).
    indices = []
    for b, t in enumerate(targets):
        labels = t['labels']
        gt = t['boxes_xyxy']                                       # (nt, 4)
        rows = logits_cm[b][labels, :].astype(jnp.float32)         # (nt, HW)
        cls_cost = -jax.nn.sigmoid(rows)
        l1_cost = jnp.sum(jnp.abs(boxes_cm[b][None, :, :] - gt[:, :, None]), axis=1)
        cost = cls_cost + l1_cost                                  # (nt, HW)
        src = jnp.argmin(cost, axis=1).astype(jnp.int32)
        indices.append((src, jnp.arange(labels.shape[0], dtype=jnp.int32)))
    return indices


def set_criterion_forward(outputs, targets, *, num_classes, alpha, gamma):
    del num_classes  # background id is no longer materialized explicitly
    pred_logits = outputs['pred_logits']     # (bs, K, H, W) NCHW, native dtype
    pred_boxes = outputs['pred_boxes']       # (bs, 4, H, W)
    bs, k, h, w = pred_logits.shape
    hw = h * w
    # channel-major flatten: pure reshape, no transpose / extra HBM traffic
    logits_cm = pred_logits.reshape(bs, k, hw)
    boxes_cm = pred_boxes.reshape(bs, 4, hw)

    indices = min_cost_matcher(logits_cm, boxes_cm, targets)

    num_boxes = float(sum(int(t['labels'].shape[0]) for t in targets))
    num_boxes = max(num_boxes, 1.0)
    # TODO(synk): reference all-reduces num_boxes over world size under DDP;
    # single-process here.

    batch_idx = jnp.concatenate([jnp.full(src.shape, b, dtype=jnp.int32)
                                 for b, (src, _) in enumerate(indices)])
    src_idx = jnp.concatenate([src for src, _ in indices])
    labels_m = jnp.concatenate([t['labels'][tgt].astype(jnp.int32)
                                for t, (_, tgt) in zip(targets, indices)])

    # ---- loss_labels: all-background kernel + tiny matched correction ------
    per_image_bg = focal_bg_loss_sum_per_image(logits_cm, alpha=alpha, gamma=gamma)
    corr = focal_matched_correction(logits_cm, batch_idx, src_idx, labels_m,
                                    alpha=alpha, gamma=gamma)
    loss_ce = (jnp.sum(per_image_bg) + corr) / num_boxes

    # ---- loss_boxes ---------------------------------------------------------
    src_boxes = boxes_cm[batch_idx, :, src_idx]                              # (M, 4)
    target_boxes = jnp.concatenate(
        [t['boxes_xyxy'][tgt] for t, (_, tgt) in zip(targets, indices)], axis=0)
    image_size = jnp.concatenate([t['image_size_xyxy_tgt'] for t in targets], axis=0)

    giou_sum, bbox_sum = box_losses_sum(src_boxes, target_boxes, image_size)

    return {'loss_ce': loss_ce,
            'loss_giou': giou_sum / num_boxes,
            'loss_bbox': bbox_sum / num_boxes}


if __name__ == "__main__":
    key = jax.random.PRNGKey(0)
    bs, num_classes, h, w = 2, 4, 16, 16
    k1, k2, k3, k4, k5 = jax.random.split(key, 5)

    pred_logits = jax.random.normal(k1, (bs, num_classes, h, w), jnp.float32)
    cxcy = jax.random.uniform(k2, (bs, 2, h, w), minval=8.0, maxval=56.0)
    wh = jax.random.uniform(k3, (bs, 2, h, w), minval=4.0, maxval=16.0)
    pred_boxes = jnp.concatenate([cxcy - wh / 2.0, cxcy + wh / 2.0], axis=1)  # xyxy

    def make_target(tkey, nt):
        ka, kb, kc = jax.random.split(tkey, 3)
        labels = jax.random.randint(ka, (nt,), 0, num_classes, dtype=jnp.int32)
        c = jax.random.uniform(kb, (nt, 2), minval=10.0, maxval=54.0)
        s = jax.random.uniform(kc, (nt, 2), minval=4.0, maxval=16.0)
        boxes = jnp.concatenate([c - s / 2.0, c + s / 2.0], axis=1)
        image_size = jnp.tile(jnp.array([[64.0, 64.0, 64.0, 64.0]], jnp.float32), (nt, 1))
        return {'labels': labels, 'boxes_xyxy': boxes, 'image_size_xyxy_tgt': image_size}

    targets = [make_target(k4, 3), make_target(k5, 2)]
    outputs = {'pred_logits': pred_logits, 'pred_boxes': pred_boxes}

    losses = set_criterion_forward(outputs, targets,
                                   num_classes=num_classes,
                                   alpha=FOCAL_ALPHA, gamma=FOCAL_GAMMA)
    jax.block_until_ready(losses)
    print("KERNEL_OK")
</pallas_src>

<mosaic_0001>
module attributes {stable_mosaic.version = 11 : i64} {
  func.func @_bg_focal_kernel(%arg0: i32, %arg1: i32, %arg2: memref<1x8x128xf32, #tpu.memory_space<vmem>>, %arg3: memref<1x1x1xf32, #tpu.memory_space<vmem>>, %arg4: memref<1x128xf32, #tpu.memory_space<vmem>>) attributes {dimension_semantics = [#tpu.dimension_semantics<parallel>, #tpu.dimension_semantics<arbitrary>], iteration_bounds = array<i64: 2, 1>, scalar_prefetch = 0 : i64, scratch_operands = 1 : i64, tpu.core_type = #tpu.core_type<tc>, window_params = [{transform_indices = @transform_0, window_bounds = array<i64: 1, 8, 128>}, {transform_indices = @transform_1, window_bounds = array<i64: 1, 1, 1>}]} {
    %c0 = arith.constant 0 : index
    %c0_0 = arith.constant 0 : index
    %c0_1 = arith.constant 0 : index
    %0 = vector.load %arg2[%c0, %c0_0, %c0_1] : memref<1x8x128xf32, #tpu.memory_space<vmem>>, vector<1x8x128xf32>
    %1 = vector.shape_cast %0 : vector<1x8x128xf32> to vector<8x128xf32>
    %2 = math.absf %1 : vector<8x128xf32>
    %cst = arith.constant 0.000000e+00 : f32
    %3 = vector.broadcast %cst : f32 to vector<8x128xf32>
    %4 = arith.subf %3, %2 : vector<8x128xf32>
    %5 = math.exp %4 : vector<8x128xf32>
    %cst_2 = arith.constant 0.000000e+00 : f32
    %6 = vector.broadcast %cst_2 : f32 to vector<8x128xf32>
    %7 = arith.maximumf %1, %6 : vector<8x128xf32>
    %8 = math.log1p %5 : vector<8x128xf32>
    %9 = arith.addf %7, %8 : vector<8x128xf32>
    %cst_3 = arith.constant 1.000000e+00 : f32
    %10 = vector.broadcast %cst_3 : f32 to vector<8x128xf32>
    %11 = arith.addf %10, %5 : vector<8x128xf32>
    %12 = tpu.reciprocal %11 {approx = true} : vector<8x128xf32> -> vector<8x128xf32>
    %cst_4 = arith.constant 0.000000e+00 : f32
    %13 = vector.broadcast %cst_4 : f32 to vector<8x128xf32>
    %14 = arith.cmpf oge, %1, %13 : vector<8x128xf32>
    %cst_5 = arith.constant 1.000000e+00 : f32
    %15 = vector.broadcast %cst_5 : f32 to vector<8x128xf32>
    %16 = arith.subf %15, %12 : vector<8x128xf32>
    %17 = arith.select %14, %12, %16 : vector<8x128xi1>, vector<8x128xf32>
    %18 = arith.mulf %17, %17 : vector<8x128xf32>
    %cst_6 = arith.constant 7.500000e-01 : f32
    %19 = vector.broadcast %cst_6 : f32 to vector<8x128xf32>
    %20 = arith.mulf %19, %9 : vector<8x128xf32>
    %21 = arith.mulf %20, %18 : vector<8x128xf32>
    %cst_7 = arith.constant dense<0.000000e+00> : vector<128xf32>
    %22 = vector.multi_reduction <add>, %21, %cst_7 [0] : vector<8x128xf32> to vector<128xf32>
    %23 = vector.shape_cast %22 : vector<128xf32> to vector<1x128xf32>
    %c0_i32 = arith.constant 0 : i32
    %24 = arith.cmpi eq, %arg1, %c0_i32 : i32
    %25 = arith.extui %24 : i1 to i32
    %c0_i32_8 = arith.constant 0 : i32
    %26 = arith.cmpi ne, %25, %c0_i32_8 : i32
    scf.if %26 {
      %c0_13 = arith.constant 0 : index
      %c0_14 = arith.constant 0 : index
      %33 = vector.load %arg4[%c0_13, %c0_14] : memref<1x128xf32, #tpu.memory_space<vmem>>, vector<1x128xf32>
      tpu.vector_store %arg4[%c0_13, %c0_14], %23 {strides = array<i32>} : memref<1x128xf32, #tpu.memory_space<vmem>>, vector<1x128xf32>,
    } else {
    }
    %c0_i32_9 = arith.constant 0 : i32
    %27 = arith.cmpi sgt, %arg1, %c0_i32_9 : i32
    %28 = arith.extui %27 : i1 to i32
    %c0_i32_10 = arith.constant 0 : i32
    %29 = arith.cmpi ne, %28, %c0_i32_10 : i32
    scf.if %29 {
      %c0_13 = arith.constant 0 : index
      %c0_14 = arith.constant 0 : index
      %33 = vector.load %arg4[%c0_13, %c0_14] : memref<1x128xf32, #tpu.memory_space<vmem>>, vector<1x128xf32>
      %34 = arith.addf %33, %23 : vector<1x128xf32>
      %c0_15 = arith.constant 0 : index
      %c0_16 = arith.constant 0 : index
      %35 = vector.load %arg4[%c0_15, %c0_16] : memref<1x128xf32, #tpu.memory_space<vmem>>, vector<1x128xf32>
      tpu.vector_store %arg4[%c0_15, %c0_16], %34 {strides = array<i32>} : memref<1x128xf32, #tpu.memory_space<vmem>>, vector<1x128xf32>,
    } else {
    }
    %c0_i32_11 = arith.constant 0 : i32
    %30 = arith.cmpi eq, %arg1, %c0_i32_11 : i32
    %31 = arith.extui %30 : i1 to i32
    %c0_i32_12 = arith.constant 0 : i32
    %32 = arith.cmpi ne, %31, %c0_i32_12 : i32
    scf.if %32 {
      %c0_13 = arith.constant 0 : index
      %c0_14 = arith.constant 0 : index
      %33 = vector.load %arg4[%c0_13, %c0_14] : memref<1x128xf32, #tpu.memory_space<vmem>>, vector<1x128xf32>
      %34 = vector.shape_cast %33 : vector<1x128xf32> to vector<1x1x128xf32>
      %cst_15 = arith.constant dense<0.000000e+00> : vector<1xf32>
      %35 = vector.multi_reduction <add>, %34, %cst_15 [1, 2] : vector<1x1x128xf32> to vector<1xf32>
      %36 = vector.shape_cast %35 : vector<1xf32> to vector<1x1x1xf32>
      %37 = vector.extract %36[0, 0, 0] : f32 from vector<1x1x1xf32>
      %38 = vector.broadcast %37 : f32 to vector<1x1x1xf32>
      %c0_16 = arith.constant 0 : index
      %c0_17 = arith.constant 0 : index
      %c0_18 = arith.constant 0 : index
      %39 = vector.load %arg3[%c0_16, %c0_17, %c0_18] : memref<1x1x1xf32, #tpu.memory_space<vmem>>, vector<1x1x1xf32>
      tpu.vector_store %arg3[%c0_16, %c0_17, %c0_18], %38 {strides = array<i32>} : memref<1x1x1xf32, #tpu.memory_space<vmem>>, vector<1x1x1xf32>,
    } else {
    }
    return
  }
  func.func @transform_0(%arg0: i32, %arg1: i32) -> (i32, i32, i32) {
    %c0_i32 = arith.constant 0 : i32
    %c0_i32_0 = arith.constant 0 : i32
    return %arg0, %c0_i32, %arg1 : i32, i32, i32
  }
  func.func @transform_1(%arg0: i32, %arg1: i32) -> (i32, i32, i32) {
    %c0_i32 = arith.constant 0 : i32
    %c0_i32_0 = arith.constant 0 : i32
    %c0_i32_1 = arith.constant 0 : i32
    return %arg0, %c0_i32, %c0_i32_0 : i32, i32, i32
  }
}

</mosaic_0001>

<llo_original>
// kernel: tpu_custom_call.1
$region0: #{tpu_custom_call.1}
  #allocation0 [shape = 'u32[]', space=smem, size = 0x4, offset = 0x4, fixed_abs, tag = 'smem constant byte address 0x4 - core index']
  #allocation1 [shape = 'u32[144,128]{1,0:T(1,128)}', space=vmem, size = 0x12000, scoped, tag = 'internal scratch']
  #allocation2 [shape = 'f32[1,128]{1,0:T(1,128)}', space=vmem, size = 0x200, scoped, tag = 'scratch operand']
  %s0 = inlined_call_operand.hbm [shape: f32[2,8,128], index: 0, kind: input, shape index: {}]
  %s1 = inlined_call_operand.vmem [shape: f32[2,1,1], index: 1, kind: output, shape index: {}]
  %s2 = sld [smem:[#allocation0]]
  $region53: #{tpu_custom_call.1} parent=0
    _
  %s4 = ssub.s32 1, %s2
  %s5 = scalar_select 0, %s4, %s2
  $region1: #{tpu_custom_call.1} parent=0
    #allocation3 [shape = 'u8[8192]{0}', space=vmem, size = 0x2000, scoped, tag = 'input window, operand 0']
    #allocation4 [shape = 's32[2]{0}', space=sflag, size = 0x8, scoped, tag = 'scoped memory for tpu_custom_call.1']
    %6 = vsyncpa [#allocation4], 0
    %s7 = scalar_lea.sflag [#allocation4], 1
    %8 = vsyncpa %s7, 0
    loop: start=0, step=1, limit=4
    $region2: #{tpu_custom_call.1} parent=1 // loop_pre_header
      _
    $region3: #{tpu_custom_call.1} parent=1 // loop_header
      %s10 = sphi 0, %s14
      %p11 = scmp.ge.s32.totalorder %s10, 4
      %s17 = sphi 0, %s29
      %s18 = sphi 0, %s25
      %s19 = sphi 0, %s17
      %s20 = sphi 0, %s18
      %s21 = sphi 0, %s19
      %s22 = sphi 0, %s20
      %s34 = sphi 0, %s36
      %s37 = sphi 0, %s34
      %s38 = sphi 0, %s37
      %s54 = sphi 0, %s38
      %s60 = sphi 0, %s62
      %s63 = sphi 0, %s60
      %s64 = sphi 0, %s63
      %s80 = sphi 0, %s64
    $region4: #{tpu_custom_call.1} parent=1 // loop_header_branch
      %13 = sbr.rel (%p11) target = $region8
    $region5: #{tpu_custom_call.1} parent=1 // loop_body
      %s15 = ssub.s32 %s10, 1
      %s16 = ssub.s32 %s10, 2
      %s23 = sadd.s32 1, %s18
      %p24 = scmp.ge.s32.totalorder %s23, 1
      %s25 = scalar_select %p24, 0, %s23
      %s26 = sadd.s32 1, %s17
      %s27 = scalar_select %p24, %s26, %s17
      %p28 = scmp.ge.s32.totalorder %s27, 2
      %s29 = scalar_select %p28, 0, %s27
      %s30 = ssub.s32 %s17, %s29
      %s31 = ssub.s32 %s18, %s25
      %s32 = sor.u32 %s30, %s31
      %p33 = scmp.eq.s32.totalorder %s32, 0
      %s35 = sadd.s32 %s34, 1
      %s36 = scalar_select %p33, %s34, %s35
      %p39 = pneg %p33
      %p40 = scmp.eq.s32.totalorder %s10, 1
      %p41 = por %p39, %p40
      %p42 = scmp.ne.s32.totalorder %s34, %s37
      %p43 = scmp.eq.s32.totalorder %s10, 0
      %p44 = por %p42, %p43
      %p45 = scmp.ne.s32.totalorder %s34, %s37
      %p46 = scmp.eq.s32.totalorder %s15, 1
      %p47 = por %p45, %p46
      %p48 = scmp.ne.s32.totalorder %s37, %s38
      %p49 = scmp.eq.s32.totalorder %s15, 0
      %p50 = por %p48, %p49
      %p51 = scmp.ne.s32.totalorder %s37, %s38
      %p52 = scmp.eq.s32.totalorder %s16, 1
      %p53 = por %p51, %p52
      %p55 = scmp.ne.s32.totalorder %s38, %s54
      %p56 = scmp.eq.s32.totalorder %s16, 0
      %p57 = por %p55, %p56
      %s58 = ssub.s32 %s17, %s29
      %p59 = scmp.eq.s32.totalorder %s58, 0
      %s61 = sadd.s32 %s60, 1
      %s62 = scalar_select %p59, %s60, %s61
      %p65 = pneg %p59
      %p66 = scmp.eq.s32.totalorder %s10, 1
      %p67 = por %p65, %p66
      %p68 = scmp.ne.s32.totalorder %s60, %s63
      %p69 = scmp.eq.s32.totalorder %s10, 0
      %p70 = por %p68, %p69
      %p71 = scmp.ne.s32.totalorder %s60, %s63
      %p72 = scmp.eq.s32.totalorder %s15, 1
      %p73 = por %p71, %p72
      %p74 = scmp.ne.s32.totalorder %s63, %s64
      %p75 = scmp.eq.s32.totalorder %s15, 0
      %p76 = por %p74, %p75
      %p77 = scmp.ne.s32.totalorder %s63, %s64
      %p78 = scmp.eq.s32.totalorder %s16, 1
      %p79 = por %p77, %p78
      %p81 = scmp.ne.s32.totalorder %s64, %s80
      %p82 = scmp.eq.s32.totalorder %s16, 0
      %p83 = por %p81, %p82
      %p84 = scmp.le.s32.totalorder 1, %s10
      %p85 = scmp.lt.s32.totalorder %s10, 3
      %p86 = pnand %p84, %p85
      %p87 = pneg %p86
      // Predicated region
      $region9: #{tpu_custom_call.1} parent=5 // pred_check
        _
      $region10: #{tpu_custom_call.1} parent=5 // pred_check_branch
        %89 = sbr.rel (%p86) target = $region12
      $region11: #{tpu_custom_call.1} parent=5 // pred_region
        %s90 = ssub.s32 %s10, 1
      $region12: #{tpu_custom_call.1} parent=5 // pred_fallthru
        _
      %p91 = scmp.lt.s32.totalorder %s10, 2
      // Predicated region
      $region13: #{tpu_custom_call.1} parent=5 // pred_check
        %p92 = pneg %p91
      $region14: #{tpu_custom_call.1} parent=5 // pred_check_branch
        %94 = sbr.rel (%p92) target = $region16
      $region15: #{tpu_custom_call.1} parent=5 // pred_region
        // Predicated region
        $region17: #{tpu_custom_call.1} parent=15 // pred_check
          %p95 = pneg %p44
        $region18: #{tpu_custom_call.1} parent=15 // pred_check_branch
          %97 = sbr.rel (%p95) target = $region20
        $region19: #{tpu_custom_call.1} parent=15 // pred_region
          %s98 = sand.u32 %s34, 1
          %s99 = scalar_lea.sflag [#allocation4], %s98
          %s100 = sand.u32 %s34, 1
          %s101 = smul.addr %s100, 8
          %s102 = scalar_lea.vmem [#allocation3], %s101
          %s104 = ssub.s32 128, 128
          %105 = vsyncadd %s99, %s104
          %s106 = sadd.s32 %s18, %s17
          %s107 = smul.addr %s106, 128
          %s108 = scalar_lea.hbm %s0, %s107
          %s110 = sshll.u32 %s102, 4
          %s111 = int_to_ptr.vmem [resolvable:$true] %s110
          %113 = dma.hbm_to_vmem [thread:$0]  %s108, 128, %s111, %s99
        $region20: #{tpu_custom_call.1} parent=15 // pred_fallthru
          _
      $region16: #{tpu_custom_call.1} parent=5 // pred_fallthru
        _
      %p114 = scmp.le.s32.totalorder 1, %s10
      %p115 = scmp.lt.s32.totalorder %s10, 3
      %p116 = pnand %p114, %p115
      %p117 = pneg %p116
      // Predicated region
      $region21: #{tpu_custom_call.1} parent=5 // pred_check
        _
      $region22: #{tpu_custom_call.1} parent=5 // pred_check_branch
        %119 = sbr.rel (%p116) target = $region24
      $region23: #{tpu_custom_call.1} parent=5 // pred_region
        %s120 = ssub.s32 %s10, 1
        %s121 = sand.u32 %s37, 1
        %s122 = scalar_lea.sflag [#allocation4], %s121
        %s123 = sand.u32 %s37, 1
        %s124 = smul.addr %s123, 8
        %s125 = scalar_lea.vmem [#allocation3], %s124
        // Predicated region
        $region25: #{tpu_custom_call.1} parent=23 // pred_check
          %p126 = pneg %p50
        $region26: #{tpu_custom_call.1} parent=23 // pred_check_branch
          %128 = sbr.rel (%p126) target = $region28
        $region27: #{tpu_custom_call.1} parent=23 // pred_region
          %129 = dma.done %s122, 128
        $region28: #{tpu_custom_call.1} parent=23 // pred_fallthru
          _
        %s130 = sand.u32 %s37, 1
        %s131 = scalar_lea.sflag [#allocation4], %s130
        %s132 = sand.u32 %s37, 1
        %s133 = smul.addr %s132, 8
        %s134 = scalar_lea.vmem [#allocation3], %s133
        %p135 = pneg %p50
        %p136 = pneg %p47
        %p137 = pneg %p76
        %p138 = pneg %p73
        %p139 = scmp.lt.s32.totalorder %s19, 1
        %s140 = scalar_select %p139, %s19, 1
        %s141 = scalar_lea.vmem %s1, %s140
        %p142 = scmp.lt.s32.totalorder %s19, 1
        %s143 = scalar_select %p142, %s19, 1
        %s144 = scalar_lea.vmem %s1, %s143
        %v145 = vld [vmem:[%s125] sm:$0xff]
        %v146 = vand.u32 2147483647, %v145
        %v147 = vsub.f32 0.0, %v146
        %v148 = vmul.f32 %v147, 1.442695
        %v149 = vpow.pop %v148
        %v150 = vmax.f32 %v145, 0.0
        %v151 = vadd.f32 %v149, 1.0
        %v152 = vlog2.pop %v151
        %v153 = vmul.f32 %v152, 0.6931472
        %v154 = vmul.f32 -0.5, %v149
        %v155 = vadd.f32 %v154, 1.0
        %v156 = vmul.f32 %v155, %v149
        %v157 = vand.u32 2147483647, %v149
        %vm158 = vcmp.lt.f32.partialorder %v157, 0.0004427343
        %v159 = vsel %vm158, %v156, %v153
        %v160 = vadd.f32 %v150, %v159
        %v161 = vadd.f32 %v149, 1.0
        %v162 = vrcp.pop %v161
        %vm163 = vcmp.ge.f32.partialorder %v145, 0.0
        %v164 = vsub.f32 1.0, %v162
        %v165 = vsel %vm163, %v162, %v164
        %v166 = vmul.f32 %v165, %v165
        %v167 = vmul.f32 %v160, 0.75
        %v168 = vmul.f32 %v167, %v166
        %v169 = vrot.slane %v168, 4
        %v170 = vadd.f32 %v168, %v169
        %v171 = vrot.slane %v170, 2
        %v172 = vadd.f32 %v170, %v171
        %v173 = vrot.slane %v172, 1
        %v174 = vadd.f32 %v172, %v173
        %p175 = scmp.eq.s32.totalorder %s20, 0
        // Predicated region
        $region29: #{tpu_custom_call.1} parent=23 // pred_check
          %p176 = pneg %p175
        $region30: #{tpu_custom_call.1} parent=23 // pred_check_branch
          %178 = sbr.rel (%p176) target = $region32
        $region31: #{tpu_custom_call.1} parent=23 // pred_region
          %179 = vst [vmem:[#allocation2] sm:$0x1] %v174
        $region32: #{tpu_custom_call.1} parent=23 // pred_fallthru
          _
        %p180 = scmp.gt.s32.totalorder %s20, 0
        // Predicated region
        $region33: #{tpu_custom_call.1} parent=23 // pred_check
          %p181 = pneg %p180
        $region34: #{tpu_custom_call.1} parent=23 // pred_check_branch
          %183 = sbr.rel (%p181) target = $region36
        $region35: #{tpu_custom_call.1} parent=23 // pred_region
          %v184 = vld [vmem:[#allocation2] sm:$0x1]
          %v185 = vadd.f32 %v184, %v174
          %186 = vst [vmem:[#allocation2] sm:$0x1] %v185
        $region36: #{tpu_custom_call.1} parent=23 // pred_fallthru
          _
        // Predicated region
        $region37: #{tpu_custom_call.1} parent=23 // pred_check
          %p187 = pneg %p175
        $region38: #{tpu_custom_call.1} parent=23 // pred_check_branch
          %189 = sbr.rel (%p187) target = $region40
        $region39: #{tpu_custom_call.1} parent=23 // pred_region
          %v190 = vld [vmem:[#allocation2] sm:$0x1]
          %vm191 = vcmask 1040384
          %v192 = vsel %vm191, %v190, 0.0
          %193 = vadd.xlane.f32.xlu0 %v192
          %v194 = vpop.xlane.xlu0 %193
          %v195 = vrot.slane %v194, 4
          %v196 = vadd.f32 %v194, %v195
          %v197 = vrot.slane %v196, 2
          %v198 = vadd.f32 %v196, %v197
          %v199 = vrot.slane %v198, 1
          %v200 = vadd.f32 %v198, %v199
          %s201 = vtos %v200
          %v202 = vstv %s201
          %vm203 = vcmask 0
          %204 = vst.msk [vmem:[%s144] sm:$0x1] %vm203, %v202
        $region40: #{tpu_custom_call.1} parent=23 // pred_fallthru
          _
        %p205 = scmp.lt.s32.totalorder %s19, 1
        %s206 = scalar_select %p205, %s19, 1
        %s207 = scalar_lea.vmem %s1, %s206
        // Predicated region
        $region41: #{tpu_custom_call.1} parent=23 // pred_check
          %p208 = pneg %p73
        $region42: #{tpu_custom_call.1} parent=23 // pred_check_branch
          %210 = sbr.rel (%p208) target = $region44
        $region43: #{tpu_custom_call.1} parent=23 // pred_region
          _
        $region44: #{tpu_custom_call.1} parent=23 // pred_fallthru
          _
      $region24: #{tpu_custom_call.1} parent=5 // pred_fallthru
        _
      %p211 = scmp.le.s32.totalorder 2, %s10
      // Predicated region
      $region45: #{tpu_custom_call.1} parent=5 // pred_check
        %p212 = pneg %p211
      $region46: #{tpu_custom_call.1} parent=5 // pred_check_branch
        %214 = sbr.rel (%p212) target = $region48
      $region47: #{tpu_custom_call.1} parent=5 // pred_region
        %s215 = ssub.s32 %s10, 2
        // Predicated region
        $region49: #{tpu_custom_call.1} parent=47 // pred_check
          %p216 = pneg %p79
        $region50: #{tpu_custom_call.1} parent=47 // pred_check_branch
          %218 = sbr.rel (%p216) target = $region52
        $region51: #{tpu_custom_call.1} parent=47 // pred_region
          %p219 = scmp.lt.s32.totalorder %s21, 1
          %s220 = scalar_select %p219, %s21, 1
          %s221 = scalar_lea.vmem %s1, %s220
        $region52: #{tpu_custom_call.1} parent=47 // pred_fallthru
          _
      $region48: #{tpu_custom_call.1} parent=5 // pred_fallthru
        _
    $region6: #{tpu_custom_call.1} parent=1 // loop_footer
      %s14 = sadd.s32 1, %s10
    $region7: #{tpu_custom_call.1} parent=1 // loop_footer_branch
      %9 = sbr.rel target = $region3
    $region8: #{tpu_custom_call.1} parent=1 // loop_exit
      _
    %222 = vsyncpa [#allocation4], 1
    %s223 = scalar_lea.sflag [#allocation4], 1
    %224 = vsyncpa %s223, 1

</llo_original>
